<compile_context>
chip_gen: v6e
topology: v6e:2x2x1
jax: 0.10.0
libtpu: 0.0.40
codegen_flags: <defaults>
</compile_context>

<pallas_src>
import functools

import jax
import jax.numpy as jnp
from jax import lax
from jax.experimental import pallas as pl
from jax.experimental.pallas import tpu as pltpu


def _bottleneck_kernel(H, W, fuse_k3x3,
                       x_ref, w1_ref, b1_ref, w2_ref, b2_ref, w3_ref, b3_ref,
                       o_ref):
    """One image per grid step.  x_ref / o_ref blocks are (1, H*W, C) bf16."""
    HW = H * W
    bf16 = jnp.bfloat16

    # ---- conv1 (1x1) + bn1 + relu.  BN scale pre-folded into w1; bias here.
    x_bf = x_ref[0]                                                    # (HW, Cin) bf16
    y1 = jnp.dot(x_bf, w1_ref[...], preferred_element_type=jnp.float32)
    y1 = jnp.maximum(y1 + b1_ref[...], 0.0)                            # (HW, P) f32

    # ---- conv2 (3x3, stride 1, pad 1) + bn2 + relu.
    # Nine taps built from y1 with pltpu.roll row shifts + iota boundary masks
    # (no padded scratch, no slice copies); taps are cast to bf16 and
    # contracted on the MXU.
    r = lax.broadcasted_iota(jnp.int32, (HW, 1), 0)    # flat row index
    w_idx = r % W                                      # column index (no // needed)
    m_w0 = w_idx >= 1                                  # has a (w-1) neighbour
    m_w2 = w_idx <= W - 2                              # has a (w+1) neighbour
    m_h0 = r >= W                                      # has an (h-1) neighbour
    m_h2 = r < HW - W                                  # has an (h+1) neighbour

    # w-shifted copies; the w-masks are W-periodic so they stay aligned under
    # the later +-W row shifts.
    c_m1 = jnp.where(m_w0, pltpu.roll(y1, 1, axis=0), 0.0)        # y1[h, w-1]
    c_p1 = jnp.where(m_w2, pltpu.roll(y1, HW - 1, axis=0), 0.0)   # y1[h, w+1]

    def taps(hshift, hmask):
        row = ([c_m1, y1, c_p1] if hshift == 0 else
               [pltpu.roll(t, hshift, axis=0) for t in (c_m1, y1, c_p1)])
        if hmask is None:
            return [t.astype(bf16) for t in row]
        return [jnp.where(hmask, t, 0.0).astype(bf16) for t in row]

    taps0 = taps(W, m_h0)        # kh = 0 : source rows h-1
    taps1 = taps(0, None)        # kh = 1 : source rows h
    taps2 = taps(HW - W, m_h2)   # kh = 2 : source rows h+1

    if fuse_k3x3:
        # Single K = 9P matmul: accumulation stays inside the MXU (v5e/v6e).
        q9 = jnp.concatenate(taps0 + taps1 + taps2, axis=-1)       # (HW, 9P) bf16
        acc = jnp.dot(q9, w2_ref[...], preferred_element_type=jnp.float32)
    else:
        # Three K = 3P matmuls (preferred on v7x: MRB accumulates in place).
        acc = jnp.dot(jnp.concatenate(taps0, axis=-1), w2_ref[0],
                      preferred_element_type=jnp.float32)
        acc += jnp.dot(jnp.concatenate(taps1, axis=-1), w2_ref[1],
                       preferred_element_type=jnp.float32)
        acc += jnp.dot(jnp.concatenate(taps2, axis=-1), w2_ref[2],
                       preferred_element_type=jnp.float32)

    y2 = jnp.maximum(acc + b2_ref[...], 0.0).astype(bf16)          # (HW, P) bf16

    # ---- conv3 (1x1) + bn3 + residual add + relu (residual upcast to f32).
    y3 = jnp.dot(y2, w3_ref[...], preferred_element_type=jnp.float32)
    y3 = y3 + b3_ref[...]
    out = jnp.maximum(y3 + x_ref[0].astype(jnp.float32), 0.0)
    o_ref[0] = out.astype(o_ref.dtype)


def _vmem_limit_bytes(HW, Cin, P, Cout, fuse_k3x3):
    """Rough per-step VMEM estimate -> scoped limit, clamped to [32, 96] MiB."""
    bf = 2
    io = 2 * HW * (Cin + Cout) * bf                      # double-buffered bf16 I/O
    weights = (Cin * P + 9 * P * P + P * Cout) * bf + (2 * P + Cout) * 4
    staging = HW * (4 * P                                # y1 (f32)
                    + 2 * 9 * P * bf                     # bf16 taps + concat copy
                    + 4 * P                              # acc (f32)
                    + 4 * Cout)                          # pre-residual (f32)
    est = io + 2 * weights + staging + (4 << 20)
    del fuse_k3x3
    return max(32 << 20, min(est, 96 << 20))


def bottleneck_pallas_nhwc(x, w1, b1, w2, b2, w3, b3, *, fuse_k3x3=True):
    """Hot-path entry (NHWC).

    x: (N, H, W, Cin); bf16 recommended (it is the kernel I/O dtype, so passing
    bf16 avoids an extra HBM-level cast).  Weights come from
    kernel_layout_params(): BN scales pre-folded into bf16 conv weights,
    b1/b2/b3 are f32 (1, C) bias rows.  Inference-mode BatchNorm only.
    Set fuse_k3x3=False on v7x (keeps the 3-matmul conv2 form).
    """
    N, H, W, Cin = x.shape
    P = w1.shape[1]
    Cout = w3.shape[1]
    assert Cin == Cout, "identity residual requires inplanes == planes * 4"
    HW = H * W

    # Flatten spatial dims in HBM (metadata-only): the kernel works on (HW, C).
    x_flat = x.astype(jnp.bfloat16).reshape(N, HW, Cin)
    if fuse_k3x3:
        w2 = w2.reshape(3 * w2.shape[1], w2.shape[2])                # (9P, P)
        w2_spec = pl.BlockSpec((9 * P, P), lambda n: (0, 0))
    else:
        w2_spec = pl.BlockSpec((3, 3 * P, P), lambda n: (0, 0, 0))

    kernel = functools.partial(_bottleneck_kernel, H, W, fuse_k3x3)

    out = pl.pallas_call(
        kernel,
        out_shape=jax.ShapeDtypeStruct((N, HW, Cout), jnp.bfloat16),
        grid_spec=pltpu.PrefetchScalarGridSpec(
            num_scalar_prefetch=0,
            grid=(N,),                                    # one image per grid step
            in_specs=[
                pl.BlockSpec((1, HW, Cin), lambda n: (n, 0, 0)),
                pl.BlockSpec((Cin, P), lambda n: (0, 0)),
                pl.BlockSpec((1, P), lambda n: (0, 0)),
                w2_spec,
                pl.BlockSpec((1, P), lambda n: (0, 0)),
                pl.BlockSpec((P, Cout), lambda n: (0, 0)),
                pl.BlockSpec((1, Cout), lambda n: (0, 0)),
            ],
            out_specs=pl.BlockSpec((1, HW, Cout), lambda n: (n, 0, 0)),
        ),
        compiler_params=pltpu.CompilerParams(
            dimension_semantics=("parallel",),            # images are independent
            vmem_limit_bytes=_vmem_limit_bytes(HW, Cin, P, Cout, fuse_k3x3)),
    )(x_flat, w1, b1, w2, b2, w3, b3)
    return out.reshape(N, H, W, Cout)


def bottleneck_pallas(x_nchw, *kparams, fuse_k3x3=True):
    """PyTorch-compatibility wrapper (NCHW in/out, bf16 out).  The transposes
    live only here; use bottleneck_pallas_nhwc in a real NHWC pipeline."""
    x = jnp.transpose(x_nchw, (0, 2, 3, 1))
    out = bottleneck_pallas_nhwc(x, *kparams, fuse_k3x3=fuse_k3x3)
    return jnp.transpose(out, (0, 3, 1, 2))


# ----------------------------- reference (pure JAX) -----------------------------
def _reference_nchw(x, p, *, emulate_bf16=True, eps=1e-5):
    """PyTorch eval-mode Bottleneck.  emulate_bf16=True mirrors the kernel's
    numerics (bf16 conv operands with BN scale folded into the weights, bf16
    input, f32 accumulation / bias / residual)."""
    def fold(w, bn):
        gamma, beta, mean, var = bn
        s = gamma / jnp.sqrt(var + eps)
        return w * s[:, None, None, None], beta - mean * s

    conv_dtype = jnp.bfloat16 if emulate_bf16 else jnp.float32

    def conv(inp, w, pad):
        return lax.conv_general_dilated(
            inp.astype(conv_dtype), w.astype(conv_dtype),
            window_strides=(1, 1), padding=[(pad, pad), (pad, pad)],
            dimension_numbers=('NCHW', 'OIHW', 'NCHW'),
            preferred_element_type=jnp.float32)

    if emulate_bf16:
        x = x.astype(jnp.bfloat16).astype(jnp.float32)   # kernel I/O is bf16
    w1f, b1 = fold(p['w1'], p['bn1'])
    w2f, b2 = fold(p['w2'], p['bn2'])
    w3f, b3 = fold(p['w3'], p['bn3'])
    out = jax.nn.relu(conv(x, w1f, 0) + b1[None, :, None, None])
    out = jax.nn.relu(conv(out, w2f, 1) + b2[None, :, None, None])
    out = conv(out, w3f, 0) + b3[None, :, None, None]
    return jax.nn.relu(out + x)


# ----------------------------- parameter init -----------------------------
def make_params(key, inplanes, planes):
    expansion = 4
    ks = jax.random.split(key, 6)

    def bn_params(k, c):
        k1, k2, k3, k4 = jax.random.split(k, 4)
        gamma = 0.5 + jax.random.uniform(k1, (c,), jnp.float32)
        beta = 0.1 * jax.random.normal(k2, (c,), jnp.float32)
        mean = 0.1 * jax.random.normal(k3, (c,), jnp.float32)
        var = 0.5 + jax.random.uniform(k4, (c,), jnp.float32)
        return gamma, beta, mean, var

    return {
        'w1': 0.2 * jax.random.normal(ks[0], (planes, inplanes, 1, 1), jnp.float32),
        'w2': 0.2 * jax.random.normal(ks[1], (planes, planes, 3, 3), jnp.float32),
        'w3': 0.2 * jax.random.normal(ks[2], (planes * expansion, planes, 1, 1), jnp.float32),
        'bn1': bn_params(ks[3], planes),
        'bn2': bn_params(ks[4], planes),
        'bn3': bn_params(ks[5], planes * expansion),
    }


def kernel_layout_params(p, eps=1e-5):
    """PyTorch OIHW conv weights + BN params -> kernel layout.
    BN scales are folded into the (bf16) conv weights; biases stay f32."""
    def fold(bn):
        gamma, beta, mean, var = bn
        s = gamma / jnp.sqrt(var + eps)
        return s, beta - mean * s

    s1, b1 = fold(p['bn1'])
    s2, b2 = fold(p['bn2'])
    s3, b3 = fold(p['bn3'])

    w1 = (jnp.transpose(p['w1'][:, :, 0, 0], (1, 0)) * s1[None, :]).astype(jnp.bfloat16)   # (Cin, P)
    w2 = jnp.transpose(p['w2'], (2, 3, 1, 0)) * s2[None, None, None, :]                    # (kh, kw, Pin, Pout)
    kh, kw, pin, pout = w2.shape
    w2 = w2.reshape(kh, kw * pin, pout).astype(jnp.bfloat16)                               # (3, 3P, P)
    w3 = (jnp.transpose(p['w3'][:, :, 0, 0], (1, 0)) * s3[None, :]).astype(jnp.bfloat16)   # (P, 4P)

    row = lambda v: v.reshape(1, -1).astype(jnp.float32)
    return (w1, row(b1), w2, row(b2), w3, row(b3))


if __name__ == "__main__":
    key = jax.random.PRNGKey(0)
    # Bottleneck(inplanes, planes, stride=1, downsample=None); identity residual
    # requires inplanes == planes * 4.
    cases = [
        # (N, inplanes, planes, H, W, fuse_k3x3)
        (2, 16, 4, 8, 8, True),     # fused K=9P conv2 path
        (1, 16, 4, 6, 12, False),   # W % 8 != 0 (flat-HW path) + 3-matmul conv2 path
    ]
    for idx, (N, inplanes, planes, H, W, fuse) in enumerate(cases):
        kx, kp, key = jax.random.split(key, 3)
        x = jax.random.normal(kx, (N, inplanes, H, W), jnp.float32)   # NCHW like PyTorch

        params = make_params(kp, inplanes, planes)
        kparams = kernel_layout_params(params)

        out = jax.block_until_ready(bottleneck_pallas(x, *kparams, fuse_k3x3=fuse))
        ref = jax.block_until_ready(_reference_nchw(x, params, emulate_bf16=True))

        assert out.shape == (N, planes * 4, H, W)
        out_f32 = out.astype(jnp.float32)
        err = jnp.max(jnp.abs(out_f32 - ref))
        assert jnp.allclose(out_f32, ref, atol=1e-2, rtol=1e-2), \
            f"case {idx}: max abs err {err}"

    print("KERNEL_OK")
</pallas_src>

<mosaic_0001>
module attributes {stable_mosaic.version = 11 : i64} {
  func.func @_bottleneck_kernel(%arg0: i32, %arg1: memref<1x64x16xbf16, #tpu.memory_space<vmem>>, %arg2: memref<16x4xbf16, #tpu.memory_space<vmem>>, %arg3: memref<1x4xf32, #tpu.memory_space<vmem>>, %arg4: memref<36x4xbf16, #tpu.memory_space<vmem>>, %arg5: memref<1x4xf32, #tpu.memory_space<vmem>>, %arg6: memref<4x16xbf16, #tpu.memory_space<vmem>>, %arg7: memref<1x16xf32, #tpu.memory_space<vmem>>, %arg8: memref<1x64x16xbf16, #tpu.memory_space<vmem>>) attributes {dimension_semantics = [#tpu.dimension_semantics<parallel>], iteration_bounds = array<i64: 2>, scalar_prefetch = 0 : i64, scratch_operands = 0 : i64, tpu.core_type = #tpu.core_type<tc>, window_params = [{transform_indices = @transform_0, window_bounds = array<i64: 1, 64, 16>}, {pipeline_mode = #tpu.pipeline_mode<synchronous>, transform_indices = @transform_1, window_bounds = array<i64: 16, 4>}, {pipeline_mode = #tpu.pipeline_mode<synchronous>, transform_indices = @transform_2, window_bounds = array<i64: 1, 4>}, {pipeline_mode = #tpu.pipeline_mode<synchronous>, transform_indices = @transform_3, window_bounds = array<i64: 36, 4>}, {pipeline_mode = #tpu.pipeline_mode<synchronous>, transform_indices = @transform_4, window_bounds = array<i64: 1, 4>}, {pipeline_mode = #tpu.pipeline_mode<synchronous>, transform_indices = @transform_5, window_bounds = array<i64: 4, 16>}, {pipeline_mode = #tpu.pipeline_mode<synchronous>, transform_indices = @transform_6, window_bounds = array<i64: 1, 16>}, {transform_indices = @transform_7, window_bounds = array<i64: 1, 64, 16>}]} {
    %c0 = arith.constant 0 : index
    %c0_0 = arith.constant 0 : index
    %c0_1 = arith.constant 0 : index
    %0 = vector.load %arg1[%c0, %c0_0, %c0_1] : memref<1x64x16xbf16, #tpu.memory_space<vmem>>, vector<1x64x16xbf16>
    %1 = vector.shape_cast %0 : vector<1x64x16xbf16> to vector<64x16xbf16>
    %c0_2 = arith.constant 0 : index
    %c0_3 = arith.constant 0 : index
    %2 = vector.load %arg2[%c0_2, %c0_3] : memref<16x4xbf16, #tpu.memory_space<vmem>>, vector<16x4xbf16>
    %cst = arith.constant dense<0.000000e+00> : vector<64x4xf32>
    %3 = tpu.matmul %1, %2, %cst {dimension_numbers = #tpu.dot_dimension_numbers<[1], [0], [0], [1], [0, 0, 1, 1], [], []>} : vector<64x16xbf16>, vector<16x4xbf16>, vector<64x4xf32> -> vector<64x4xf32>
    %c0_4 = arith.constant 0 : index
    %c0_5 = arith.constant 0 : index
    %4 = vector.load %arg3[%c0_4, %c0_5] : memref<1x4xf32, #tpu.memory_space<vmem>>, vector<1x4xf32>
    %5 = vector.broadcast %4 : vector<1x4xf32> to vector<64x4xf32>
    %6 = arith.addf %3, %5 : vector<64x4xf32>
    %cst_6 = arith.constant 0.000000e+00 : f32
    %7 = vector.broadcast %cst_6 : f32 to vector<64x4xf32>
    %8 = arith.maximumf %6, %7 : vector<64x4xf32>
    %9 = tpu.iota {dimensions = array<i32: 0>} : vector<64x1xi32>
    %c8_i32 = arith.constant 8 : i32
    %c0_i32 = arith.constant 0 : i32
    %10 = arith.cmpi eq, %c8_i32, %c0_i32 : i32
    %c1_i32 = arith.constant 1 : i32
    %11 = arith.select %10, %c1_i32, %c8_i32 : i32
    %12 = vector.broadcast %11 : i32 to vector<64x1xi32>
    %13 = arith.remsi %9, %12 : vector<64x1xi32>
    %c0_i32_7 = arith.constant 0 : i32
    %14 = vector.broadcast %c0_i32_7 : i32 to vector<64x1xi32>
    %15 = arith.cmpi ne, %13, %14 : vector<64x1xi32>
    %c0_i32_8 = arith.constant 0 : i32
    %16 = vector.broadcast %c0_i32_8 : i32 to vector<64x1xi32>
    %17 = arith.cmpi slt, %13, %16 : vector<64x1xi32>
    %c0_i32_9 = arith.constant 0 : i32
    %18 = arith.cmpi slt, %11, %c0_i32_9 : i32
    %19 = vector.broadcast %18 : i1 to vector<64x1xi1>
    %20 = vector.broadcast %19 : vector<64x1xi1> to vector<64x1xi1>
    %21 = arith.xori %17, %20 : vector<64x1xi1>
    %22 = arith.andi %21, %15 : vector<64x1xi1>
    %23 = vector.broadcast %11 : i32 to vector<64x1xi32>
    %24 = arith.addi %13, %23 : vector<64x1xi32>
    %25 = arith.select %22, %24, %13 : vector<64x1xi1>, vector<64x1xi32>
    %c1_i32_10 = arith.constant 1 : i32
    %26 = vector.broadcast %c1_i32_10 : i32 to vector<64x1xi32>
    %27 = arith.cmpi sge, %25, %26 : vector<64x1xi32>
    %c6_i32 = arith.constant 6 : i32
    %28 = vector.broadcast %c6_i32 : i32 to vector<64x1xi32>
    %29 = arith.cmpi sle, %25, %28 : vector<64x1xi32>
    %c8_i32_11 = arith.constant 8 : i32
    %30 = vector.broadcast %c8_i32_11 : i32 to vector<64x1xi32>
    %31 = arith.cmpi sge, %9, %30 : vector<64x1xi32>
    %c56_i32 = arith.constant 56 : i32
    %32 = vector.broadcast %c56_i32 : i32 to vector<64x1xi32>
    %33 = arith.cmpi slt, %9, %32 : vector<64x1xi32>
    %c1_i32_12 = arith.constant 1 : i32
    %34 = tpu.dynamic_rotate %8 by %c1_i32_12 dim 0 : vector<64x4xf32>, i32 -> vector<64x4xf32>
    %cst_13 = arith.constant 0.000000e+00 : f32
    %35 = vector.shape_cast %27 : vector<64x1xi1> to vector<64x1xi1>
    %36 = vector.broadcast %35 : vector<64x1xi1> to vector<64x4xi1>
    %37 = vector.broadcast %cst_13 : f32 to vector<64x4xf32>
    %38 = arith.select %36, %34, %37 : vector<64x4xi1>, vector<64x4xf32>
    %c63_i32 = arith.constant 63 : i32
    %39 = tpu.dynamic_rotate %8 by %c63_i32 dim 0 : vector<64x4xf32>, i32 -> vector<64x4xf32>
    %cst_14 = arith.constant 0.000000e+00 : f32
    %40 = vector.shape_cast %29 : vector<64x1xi1> to vector<64x1xi1>
    %41 = vector.broadcast %40 : vector<64x1xi1> to vector<64x4xi1>
    %42 = vector.broadcast %cst_14 : f32 to vector<64x4xf32>
    %43 = arith.select %41, %39, %42 : vector<64x4xi1>, vector<64x4xf32>
    %c8_i32_15 = arith.constant 8 : i32
    %44 = tpu.dynamic_rotate %38 by %c8_i32_15 dim 0 : vector<64x4xf32>, i32 -> vector<64x4xf32>
    %c8_i32_16 = arith.constant 8 : i32
    %45 = tpu.dynamic_rotate %8 by %c8_i32_16 dim 0 : vector<64x4xf32>, i32 -> vector<64x4xf32>
    %c8_i32_17 = arith.constant 8 : i32
    %46 = tpu.dynamic_rotate %43 by %c8_i32_17 dim 0 : vector<64x4xf32>, i32 -> vector<64x4xf32>
    %cst_18 = arith.constant 0.000000e+00 : f32
    %47 = vector.shape_cast %31 : vector<64x1xi1> to vector<64x1xi1>
    %48 = vector.broadcast %47 : vector<64x1xi1> to vector<64x4xi1>
    %49 = vector.broadcast %cst_18 : f32 to vector<64x4xf32>
    %50 = arith.select %48, %44, %49 : vector<64x4xi1>, vector<64x4xf32>
    %51 = arith.truncf %50 : vector<64x4xf32> to vector<64x4xbf16>
    %cst_19 = arith.constant 0.000000e+00 : f32
    %52 = vector.shape_cast %31 : vector<64x1xi1> to vector<64x1xi1>
    %53 = vector.broadcast %52 : vector<64x1xi1> to vector<64x4xi1>
    %54 = vector.broadcast %cst_19 : f32 to vector<64x4xf32>
    %55 = arith.select %53, %45, %54 : vector<64x4xi1>, vector<64x4xf32>
    %56 = arith.truncf %55 : vector<64x4xf32> to vector<64x4xbf16>
    %cst_20 = arith.constant 0.000000e+00 : f32
    %57 = vector.shape_cast %31 : vector<64x1xi1> to vector<64x1xi1>
    %58 = vector.broadcast %57 : vector<64x1xi1> to vector<64x4xi1>
    %59 = vector.broadcast %cst_20 : f32 to vector<64x4xf32>
    %60 = arith.select %58, %46, %59 : vector<64x4xi1>, vector<64x4xf32>
    %61 = arith.truncf %60 : vector<64x4xf32> to vector<64x4xbf16>
    %62 = arith.truncf %38 : vector<64x4xf32> to vector<64x4xbf16>
    %63 = arith.truncf %8 : vector<64x4xf32> to vector<64x4xbf16>
    %64 = arith.truncf %43 : vector<64x4xf32> to vector<64x4xbf16>
    %c56_i32_21 = arith.constant 56 : i32
    %65 = tpu.dynamic_rotate %38 by %c56_i32_21 dim 0 : vector<64x4xf32>, i32 -> vector<64x4xf32>
    %c56_i32_22 = arith.constant 56 : i32
    %66 = tpu.dynamic_rotate %8 by %c56_i32_22 dim 0 : vector<64x4xf32>, i32 -> vector<64x4xf32>
    %c56_i32_23 = arith.constant 56 : i32
    %67 = tpu.dynamic_rotate %43 by %c56_i32_23 dim 0 : vector<64x4xf32>, i32 -> vector<64x4xf32>
    %cst_24 = arith.constant 0.000000e+00 : f32
    %68 = vector.shape_cast %33 : vector<64x1xi1> to vector<64x1xi1>
    %69 = vector.broadcast %68 : vector<64x1xi1> to vector<64x4xi1>
    %70 = vector.broadcast %cst_24 : f32 to vector<64x4xf32>
    %71 = arith.select %69, %65, %70 : vector<64x4xi1>, vector<64x4xf32>
    %72 = arith.truncf %71 : vector<64x4xf32> to vector<64x4xbf16>
    %cst_25 = arith.constant 0.000000e+00 : f32
    %73 = vector.shape_cast %33 : vector<64x1xi1> to vector<64x1xi1>
    %74 = vector.broadcast %73 : vector<64x1xi1> to vector<64x4xi1>
    %75 = vector.broadcast %cst_25 : f32 to vector<64x4xf32>
    %76 = arith.select %74, %66, %75 : vector<64x4xi1>, vector<64x4xf32>
    %77 = arith.truncf %76 : vector<64x4xf32> to vector<64x4xbf16>
    %cst_26 = arith.constant 0.000000e+00 : f32
    %78 = vector.shape_cast %33 : vector<64x1xi1> to vector<64x1xi1>
    %79 = vector.broadcast %78 : vector<64x1xi1> to vector<64x4xi1>
    %80 = vector.broadcast %cst_26 : f32 to vector<64x4xf32>
    %81 = arith.select %79, %67, %80 : vector<64x4xi1>, vector<64x4xf32>
    %82 = arith.truncf %81 : vector<64x4xf32> to vector<64x4xbf16>
    %83 = tpu.concatenate %51, %56, %61, %62, %63, %64, %72, %77, %82 in 1 : vector<64x4xbf16>, vector<64x4xbf16>, vector<64x4xbf16>, vector<64x4xbf16>, vector<64x4xbf16>, vector<64x4xbf16>, vector<64x4xbf16>, vector<64x4xbf16>, vector<64x4xbf16> -> vector<64x36xbf16>
    %c0_27 = arith.constant 0 : index
    %c0_28 = arith.constant 0 : index
    %84 = vector.load %arg4[%c0_27, %c0_28] : memref<36x4xbf16, #tpu.memory_space<vmem>>, vector<36x4xbf16>
    %cst_29 = arith.constant dense<0.000000e+00> : vector<64x4xf32>
    %85 = tpu.matmul %83, %84, %cst_29 {dimension_numbers = #tpu.dot_dimension_numbers<[1], [0], [0], [1], [0, 0, 1, 1], [], []>} : vector<64x36xbf16>, vector<36x4xbf16>, vector<64x4xf32> -> vector<64x4xf32>
    %c0_30 = arith.constant 0 : index
    %c0_31 = arith.constant 0 : index
    %86 = vector.load %arg5[%c0_30, %c0_31] : memref<1x4xf32, #tpu.memory_space<vmem>>, vector<1x4xf32>
    %87 = vector.broadcast %86 : vector<1x4xf32> to vector<64x4xf32>
    %88 = arith.addf %85, %87 : vector<64x4xf32>
    %cst_32 = arith.constant 0.000000e+00 : f32
    %89 = vector.broadcast %cst_32 : f32 to vector<64x4xf32>
    %90 = arith.maximumf %88, %89 : vector<64x4xf32>
    %91 = arith.truncf %90 : vector<64x4xf32> to vector<64x4xbf16>
    %c0_33 = arith.constant 0 : index
    %c0_34 = arith.constant 0 : index
    %92 = vector.load %arg6[%c0_33, %c0_34] : memref<4x16xbf16, #tpu.memory_space<vmem>>, vector<4x16xbf16>
    %cst_35 = arith.constant dense<0.000000e+00> : vector<64x16xf32>
    %93 = tpu.matmul %91, %92, %cst_35 {dimension_numbers = #tpu.dot_dimension_numbers<[1], [0], [0], [1], [0, 0, 1, 1], [], []>} : vector<64x4xbf16>, vector<4x16xbf16>, vector<64x16xf32> -> vector<64x16xf32>
    %c0_36 = arith.constant 0 : index
    %c0_37 = arith.constant 0 : index
    %94 = vector.load %arg7[%c0_36, %c0_37] : memref<1x16xf32, #tpu.memory_space<vmem>>, vector<1x16xf32>
    %95 = vector.broadcast %94 : vector<1x16xf32> to vector<64x16xf32>
    %96 = arith.addf %93, %95 : vector<64x16xf32>
    %c0_38 = arith.constant 0 : index
    %c0_39 = arith.constant 0 : index
    %c0_40 = arith.constant 0 : index
    %97 = vector.load %arg1[%c0_38, %c0_39, %c0_40] : memref<1x64x16xbf16, #tpu.memory_space<vmem>>, vector<1x64x16xbf16>
    %98 = vector.shape_cast %97 : vector<1x64x16xbf16> to vector<64x16xbf16>
    %99 = arith.extf %98 : vector<64x16xbf16> to vector<64x16xf32>
    %100 = arith.addf %96, %99 : vector<64x16xf32>
    %cst_41 = arith.constant 0.000000e+00 : f32
    %101 = vector.broadcast %cst_41 : f32 to vector<64x16xf32>
    %102 = arith.maximumf %100, %101 : vector<64x16xf32>
    %103 = arith.truncf %102 : vector<64x16xf32> to vector<64x16xbf16>
    %c0_42 = arith.constant 0 : index
    %c0_43 = arith.constant 0 : index
    %c0_44 = arith.constant 0 : index
    %104 = vector.load %arg8[%c0_42, %c0_43, %c0_44] : memref<1x64x16xbf16, #tpu.memory_space<vmem>>, vector<1x64x16xbf16>
    %105 = vector.shape_cast %104 : vector<1x64x16xbf16> to vector<64x16xbf16>
    %106 = vector.shape_cast %103 : vector<64x16xbf16> to vector<1x64x16xbf16>
    tpu.vector_store %arg8[%c0_42, %c0_43, %c0_44], %106 {strides = array<i32>} : memref<1x64x16xbf16, #tpu.memory_space<vmem>>, vector<1x64x16xbf16>,
    return
  }
  func.func @transform_0(%arg0: i32) -> (i32, i32, i32) {
    %c0_i32 = arith.constant 0 : i32
    %c0_i32_0 = arith.constant 0 : i32
    %c0_i32_1 = arith.constant 0 : i32
    return %arg0, %c0_i32, %c0_i32_0 : i32, i32, i32
  }
  func.func @transform_1(%arg0: i32) -> (i32, i32) {
    %c0_i32 = arith.constant 0 : i32
    %c0_i32_0 = arith.constant 0 : i32
    %c0_i32_1 = arith.constant 0 : i32
    return %c0_i32, %c0_i32_0 : i32, i32
  }
  func.func @transform_2(%arg0: i32) -> (i32, i32) {
    %c0_i32 = arith.constant 0 : i32
    %c0_i32_0 = arith.constant 0 : i32
    %c0_i32_1 = arith.constant 0 : i32
    return %c0_i32, %c0_i32_0 : i32, i32
  }
  func.func @transform_3(%arg0: i32) -> (i32, i32) {
    %c0_i32 = arith.constant 0 : i32
    %c0_i32_0 = arith.constant 0 : i32
    %c0_i32_1 = arith.constant 0 : i32
    return %c0_i32, %c0_i32_0 : i32, i32
  }
  func.func @transform_4(%arg0: i32) -> (i32, i32) {
    %c0_i32 = arith.constant 0 : i32
    %c0_i32_0 = arith.constant 0 : i32
    %c0_i32_1 = arith.constant 0 : i32
    return %c0_i32, %c0_i32_0 : i32, i32
  }
  func.func @transform_5(%arg0: i32) -> (i32, i32) {
    %c0_i32 = arith.constant 0 : i32
    %c0_i32_0 = arith.constant 0 : i32
    %c0_i32_1 = arith.constant 0 : i32
    return %c0_i32, %c0_i32_0 : i32, i32
  }
  func.func @transform_6(%arg0: i32) -> (i32, i32) {
    %c0_i32 = arith.constant 0 : i32
    %c0_i32_0 = arith.constant 0 : i32
    %c0_i32_1 = arith.constant 0 : i32
    return %c0_i32, %c0_i32_0 : i32, i32
  }
  func.func @transform_7(%arg0: i32) -> (i32, i32, i32) {
    %c0_i32 = arith.constant 0 : i32
    %c0_i32_0 = arith.constant 0 : i32
    %c0_i32_1 = arith.constant 0 : i32
    return %arg0, %c0_i32, %c0_i32_0 : i32, i32, i32
  }
}

</mosaic_0001>

<llo_original>
// kernel: tpu_custom_call.1
$region0: #{tpu_custom_call.1}
  #allocation0 [shape = 'u32[]', space=smem, size = 0x4, offset = 0x4, fixed_abs, tag = 'smem constant byte address 0x4 - core index']
  #allocation1 [shape = 'u32[144,128]{1,0:T(1,128)}', space=vmem, size = 0x12000, scoped, tag = 'internal scratch']
  %s0 = inlined_call_operand.vmem [shape: bf16[2,64,16], index: 0, kind: input, shape index: {}]
  %s1 = inlined_call_operand.vmem [shape: bf16[16,4], index: 1, kind: input, shape index: {}]
  %s2 = inlined_call_operand.vmem [shape: f32[1,4], index: 2, kind: input, shape index: {}]
  %s3 = inlined_call_operand.vmem [shape: bf16[36,4], index: 3, kind: input, shape index: {}]
  %s4 = inlined_call_operand.vmem [shape: f32[1,4], index: 4, kind: input, shape index: {}]
  %s5 = inlined_call_operand.vmem [shape: bf16[4,16], index: 5, kind: input, shape index: {}]
  %s6 = inlined_call_operand.vmem [shape: f32[1,16], index: 6, kind: input, shape index: {}]
  %s7 = inlined_call_operand.vmem [shape: bf16[2,64,16], index: 7, kind: output, shape index: {}]
  %s8 = sld [smem:[#allocation0]]
  $region61: #{tpu_custom_call.1} parent=0
    _
  %s10 = ssub.s32 1, %s8
  %s11 = scalar_select 0, %s10, %s8
  loop: start=0, step=1, limit=4
  $region2: #{tpu_custom_call.1} parent=0 // loop_pre_header
    _
  $region3: #{tpu_custom_call.1} parent=0 // loop_header
    %s13 = sphi 0, %s17
    %p14 = scmp.ge.s32.totalorder %s13, 4
    %s23 = sphi 0, %s25
    %s26 = sphi 0, %s23
    %s27 = sphi 0, %s26
    %s43 = sphi 0, %s27
    %s47 = sphi 0, %s47
    %s49 = sphi 0, %s47
    %s50 = sphi 0, %s49
    %s64 = sphi 0, %s50
    %s68 = sphi 0, %s68
    %s70 = sphi 0, %s68
    %s71 = sphi 0, %s70
    %s85 = sphi 0, %s71
    %s89 = sphi 0, %s89
    %s91 = sphi 0, %s89
    %s92 = sphi 0, %s91
    %s106 = sphi 0, %s92
    %s110 = sphi 0, %s110
    %s112 = sphi 0, %s110
    %s113 = sphi 0, %s112
    %s127 = sphi 0, %s113
    %s131 = sphi 0, %s131
    %s133 = sphi 0, %s131
    %s134 = sphi 0, %s133
    %s148 = sphi 0, %s134
    %s152 = sphi 0, %s152
    %s154 = sphi 0, %s152
    %s155 = sphi 0, %s154
    %s169 = sphi 0, %s155
    %s175 = sphi 0, %s177
    %s178 = sphi 0, %s175
    %s179 = sphi 0, %s178
    %s195 = sphi 0, %s179
  $region4: #{tpu_custom_call.1} parent=0 // loop_header_branch
    %16 = sbr.rel (%p14) target = $region8
  $region5: #{tpu_custom_call.1} parent=0 // loop_body
    %s18 = ssub.s32 %s13, 1
    %s19 = ssub.s32 %s13, 2
    %s20 = sadd.s32 %s13, 1
    %s21 = ssub.s32 %s13, %s20
    %p22 = scmp.eq.s32.totalorder %s21, 0
    %s24 = sadd.s32 %s23, 1
    %s25 = scalar_select %p22, %s23, %s24
    %p28 = pneg %p22
    %p29 = scmp.eq.s32.totalorder %s13, 1
    %p30 = por %p28, %p29
    %p31 = scmp.ne.s32.totalorder %s23, %s26
    %p32 = scmp.eq.s32.totalorder %s13, 0
    %p33 = por %p31, %p32
    %p34 = scmp.ne.s32.totalorder %s23, %s26
    %p35 = scmp.eq.s32.totalorder %s18, 1
    %p36 = por %p34, %p35
    %p37 = scmp.ne.s32.totalorder %s26, %s27
    %p38 = scmp.eq.s32.totalorder %s18, 0
    %p39 = por %p37, %p38
    %p40 = scmp.ne.s32.totalorder %s26, %s27
    %p41 = scmp.eq.s32.totalorder %s19, 1
    %p42 = por %p40, %p41
    %p44 = scmp.ne.s32.totalorder %s27, %s43
    %p45 = scmp.eq.s32.totalorder %s19, 0
    %p46 = por %p44, %p45
    %s48 = sadd.s32 %s47, 1
    %p51 = scmp.eq.s32.totalorder %s13, 1
    %p52 = scmp.ne.s32.totalorder %s47, %s49
    %p53 = scmp.eq.s32.totalorder %s13, 0
    %p54 = por %p52, %p53
    %p55 = scmp.ne.s32.totalorder %s47, %s49
    %p56 = scmp.eq.s32.totalorder %s18, 1
    %p57 = por %p55, %p56
    %p58 = scmp.ne.s32.totalorder %s49, %s50
    %p59 = scmp.eq.s32.totalorder %s18, 0
    %p60 = por %p58, %p59
    %p61 = scmp.ne.s32.totalorder %s49, %s50
    %p62 = scmp.eq.s32.totalorder %s19, 1
    %p63 = por %p61, %p62
    %p65 = scmp.ne.s32.totalorder %s50, %s64
    %p66 = scmp.eq.s32.totalorder %s19, 0
    %p67 = por %p65, %p66
    %s69 = sadd.s32 %s68, 1
    %p72 = scmp.eq.s32.totalorder %s13, 1
    %p73 = scmp.ne.s32.totalorder %s68, %s70
    %p74 = scmp.eq.s32.totalorder %s13, 0
    %p75 = por %p73, %p74
    %p76 = scmp.ne.s32.totalorder %s68, %s70
    %p77 = scmp.eq.s32.totalorder %s18, 1
    %p78 = por %p76, %p77
    %p79 = scmp.ne.s32.totalorder %s70, %s71
    %p80 = scmp.eq.s32.totalorder %s18, 0
    %p81 = por %p79, %p80
    %p82 = scmp.ne.s32.totalorder %s70, %s71
    %p83 = scmp.eq.s32.totalorder %s19, 1
    %p84 = por %p82, %p83
    %p86 = scmp.ne.s32.totalorder %s71, %s85
    %p87 = scmp.eq.s32.totalorder %s19, 0
    %p88 = por %p86, %p87
    %s90 = sadd.s32 %s89, 1
    %p93 = scmp.eq.s32.totalorder %s13, 1
    %p94 = scmp.ne.s32.totalorder %s89, %s91
    %p95 = scmp.eq.s32.totalorder %s13, 0
    %p96 = por %p94, %p95
    %p97 = scmp.ne.s32.totalorder %s89, %s91
    %p98 = scmp.eq.s32.totalorder %s18, 1
    %p99 = por %p97, %p98
    %p100 = scmp.ne.s32.totalorder %s91, %s92
    %p101 = scmp.eq.s32.totalorder %s18, 0
    %p102 = por %p100, %p101
    %p103 = scmp.ne.s32.totalorder %s91, %s92
    %p104 = scmp.eq.s32.totalorder %s19, 1
    %p105 = por %p103, %p104
    %p107 = scmp.ne.s32.totalorder %s92, %s106
    %p108 = scmp.eq.s32.totalorder %s19, 0
    %p109 = por %p107, %p108
    %s111 = sadd.s32 %s110, 1
    %p114 = scmp.eq.s32.totalorder %s13, 1
    %p115 = scmp.ne.s32.totalorder %s110, %s112
    %p116 = scmp.eq.s32.totalorder %s13, 0
    %p117 = por %p115, %p116
    %p118 = scmp.ne.s32.totalorder %s110, %s112
    %p119 = scmp.eq.s32.totalorder %s18, 1
    %p120 = por %p118, %p119
    %p121 = scmp.ne.s32.totalorder %s112, %s113
    %p122 = scmp.eq.s32.totalorder %s18, 0
    %p123 = por %p121, %p122
    %p124 = scmp.ne.s32.totalorder %s112, %s113
    %p125 = scmp.eq.s32.totalorder %s19, 1
    %p126 = por %p124, %p125
    %p128 = scmp.ne.s32.totalorder %s113, %s127
    %p129 = scmp.eq.s32.totalorder %s19, 0
    %p130 = por %p128, %p129
    %s132 = sadd.s32 %s131, 1
    %p135 = scmp.eq.s32.totalorder %s13, 1
    %p136 = scmp.ne.s32.totalorder %s131, %s133
    %p137 = scmp.eq.s32.totalorder %s13, 0
    %p138 = por %p136, %p137
    %p139 = scmp.ne.s32.totalorder %s131, %s133
    %p140 = scmp.eq.s32.totalorder %s18, 1
    %p141 = por %p139, %p140
    %p142 = scmp.ne.s32.totalorder %s133, %s134
    %p143 = scmp.eq.s32.totalorder %s18, 0
    %p144 = por %p142, %p143
    %p145 = scmp.ne.s32.totalorder %s133, %s134
    %p146 = scmp.eq.s32.totalorder %s19, 1
    %p147 = por %p145, %p146
    %p149 = scmp.ne.s32.totalorder %s134, %s148
    %p150 = scmp.eq.s32.totalorder %s19, 0
    %p151 = por %p149, %p150
    %s153 = sadd.s32 %s152, 1
    %p156 = scmp.eq.s32.totalorder %s13, 1
    %p157 = scmp.ne.s32.totalorder %s152, %s154
    %p158 = scmp.eq.s32.totalorder %s13, 0
    %p159 = por %p157, %p158
    %p160 = scmp.ne.s32.totalorder %s152, %s154
    %p161 = scmp.eq.s32.totalorder %s18, 1
    %p162 = por %p160, %p161
    %p163 = scmp.ne.s32.totalorder %s154, %s155
    %p164 = scmp.eq.s32.totalorder %s18, 0
    %p165 = por %p163, %p164
    %p166 = scmp.ne.s32.totalorder %s154, %s155
    %p167 = scmp.eq.s32.totalorder %s19, 1
    %p168 = por %p166, %p167
    %p170 = scmp.ne.s32.totalorder %s155, %s169
    %p171 = scmp.eq.s32.totalorder %s19, 0
    %p172 = por %p170, %p171
    %s173 = ssub.s32 %s13, %s20
    %p174 = scmp.eq.s32.totalorder %s173, 0
    %s176 = sadd.s32 %s175, 1
    %s177 = scalar_select %p174, %s175, %s176
    %p180 = pneg %p174
    %p181 = scmp.eq.s32.totalorder %s13, 1
    %p182 = por %p180, %p181
    %p183 = scmp.ne.s32.totalorder %s175, %s178
    %p184 = scmp.eq.s32.totalorder %s13, 0
    %p185 = por %p183, %p184
    %p186 = scmp.ne.s32.totalorder %s175, %s178
    %p187 = scmp.eq.s32.totalorder %s18, 1
    %p188 = por %p186, %p187
    %p189 = scmp.ne.s32.totalorder %s178, %s179
    %p190 = scmp.eq.s32.totalorder %s18, 0
    %p191 = por %p189, %p190
    %p192 = scmp.ne.s32.totalorder %s178, %s179
    %p193 = scmp.eq.s32.totalorder %s19, 1
    %p194 = por %p192, %p193
    %p196 = scmp.ne.s32.totalorder %s179, %s195
    %p197 = scmp.eq.s32.totalorder %s19, 0
    %p198 = por %p196, %p197
    %p199 = scmp.le.s32.totalorder 1, %s13
    %p200 = scmp.lt.s32.totalorder %s13, 3
    %p201 = pnand %p199, %p200
    %p202 = pneg %p201
    // Predicated region
    $region9: #{tpu_custom_call.1} parent=5 // pred_check
      _
    $region10: #{tpu_custom_call.1} parent=5 // pred_check_branch
      %204 = sbr.rel (%p201) target = $region12
    $region11: #{tpu_custom_call.1} parent=5 // pred_region
      %s205 = ssub.s32 %s13, 1
      // Predicated region
      $region13: #{tpu_custom_call.1} parent=11 // pred_check
        %p206 = pneg %p60
      $region14: #{tpu_custom_call.1} parent=11 // pred_check_branch
        %208 = sbr.rel (%p206) target = $region16
      $region15: #{tpu_custom_call.1} parent=11 // pred_region
        _
      $region16: #{tpu_custom_call.1} parent=11 // pred_fallthru
        _
      // Predicated region
      $region17: #{tpu_custom_call.1} parent=11 // pred_check
        %p209 = pneg %p81
      $region18: #{tpu_custom_call.1} parent=11 // pred_check_branch
        %211 = sbr.rel (%p209) target = $region20
      $region19: #{tpu_custom_call.1} parent=11 // pred_region
        _
      $region20: #{tpu_custom_call.1} parent=11 // pred_fallthru
        _
      // Predicated region
      $region21: #{tpu_custom_call.1} parent=11 // pred_check
        %p212 = pneg %p102
      $region22: #{tpu_custom_call.1} parent=11 // pred_check_branch
        %214 = sbr.rel (%p212) target = $region24
      $region23: #{tpu_custom_call.1} parent=11 // pred_region
        _
      $region24: #{tpu_custom_call.1} parent=11 // pred_fallthru
        _
      // Predicated region
      $region25: #{tpu_custom_call.1} parent=11 // pred_check
        %p215 = pneg %p123
      $region26: #{tpu_custom_call.1} parent=11 // pred_check_branch
        %217 = sbr.rel (%p215) target = $region28
      $region27: #{tpu_custom_call.1} parent=11 // pred_region
        _
      $region28: #{tpu_custom_call.1} parent=11 // pred_fallthru
        _
      // Predicated region
      $region29: #{tpu_custom_call.1} parent=11 // pred_check
        %p218 = pneg %p144
      $region30: #{tpu_custom_call.1} parent=11 // pred_check_branch
        %220 = sbr.rel (%p218) target = $region32
      $region31: #{tpu_custom_call.1} parent=11 // pred_region
        _
      $region32: #{tpu_custom_call.1} parent=11 // pred_fallthru
        _
      // Predicated region
      $region33: #{tpu_custom_call.1} parent=11 // pred_check
        %p221 = pneg %p165
      $region34: #{tpu_custom_call.1} parent=11 // pred_check_branch
        %223 = sbr.rel (%p221) target = $region36
      $region35: #{tpu_custom_call.1} parent=11 // pred_region
        _
      $region36: #{tpu_custom_call.1} parent=11 // pred_fallthru
        _
    $region12: #{tpu_custom_call.1} parent=5 // pred_fallthru
      _
    %p224 = scmp.lt.s32.totalorder %s13, 2
    // Predicated region
    $region37: #{tpu_custom_call.1} parent=5 // pred_check
      %p225 = pneg %p224
    $region38: #{tpu_custom_call.1} parent=5 // pred_check_branch
      %227 = sbr.rel (%p225) target = $region40
    $region39: #{tpu_custom_call.1} parent=5 // pred_region
      // Predicated region
      $region41: #{tpu_custom_call.1} parent=39 // pred_check
        %p228 = pneg %p33
      $region42: #{tpu_custom_call.1} parent=39 // pred_check_branch
        %230 = sbr.rel (%p228) target = $region44
      $region43: #{tpu_custom_call.1} parent=39 // pred_region
        %p231 = scmp.lt.s32.totalorder %s13, 1
        %s232 = scalar_select %p231, %s13, 1
        %s233 = smul.addr %s232, 8
        %s234 = smul.addr %s233, 4
        %s235 = scalar_lea.vmem %s0, %s234
      $region44: #{tpu_custom_call.1} parent=39 // pred_fallthru
        _
    $region40: #{tpu_custom_call.1} parent=5 // pred_fallthru
      _
    %p236 = scmp.le.s32.totalorder 1, %s13
    %p237 = scmp.lt.s32.totalorder %s13, 3
    %p238 = pnand %p236, %p237
    %p239 = pneg %p238
    // Predicated region
    $region45: #{tpu_custom_call.1} parent=5 // pred_check
      _
    $region46: #{tpu_custom_call.1} parent=5 // pred_check_branch
      %241 = sbr.rel (%p238) target = $region48
    $region47: #{tpu_custom_call.1} parent=5 // pred_region
      %s242 = ssub.s32 %s13, 1
      %p243 = scmp.lt.s32.totalorder %s18, 1
      %s244 = scalar_select %p243, %s18, 1
      %s245 = smul.addr %s244, 8
      %s246 = smul.addr %s245, 4
      %s247 = scalar_lea.vmem %s0, %s246
      %p248 = pneg %p39
      %p249 = pneg %p36
      %p250 = pneg %p60
      %p251 = pneg %p57
      %p252 = pneg %p81
      %p253 = pneg %p78
      %p254 = pneg %p102
      %p255 = pneg %p99
      %p256 = pneg %p123
      %p257 = pneg %p120
      %p258 = pneg %p144
      %p259 = pneg %p141
      %p260 = pneg %p165
      %p261 = pneg %p162
      %p262 = pneg %p191
      %p263 = pneg %p188
      %p264 = scmp.lt.s32.totalorder %s18, 1
      %s265 = scalar_select %p264, %s18, 1
      %s266 = smul.addr %s265, 8
      %s267 = smul.addr %s266, 4
      %s268 = scalar_lea.vmem %s7, %s267
      %p269 = scmp.lt.s32.totalorder %s18, 1
      %s270 = scalar_select %p269, %s18, 1
      %s271 = smul.addr %s270, 8
      %s272 = smul.addr %s271, 4
      %s273 = scalar_lea.vmem %s0, %s272
      %p274 = scmp.lt.s32.totalorder %s18, 1
      %s275 = scalar_select %p274, %s18, 1
      %s276 = smul.addr %s275, 8
      %s277 = smul.addr %s276, 4
      %s278 = scalar_lea.vmem %s7, %s277
      %v280 = vld [vmem:[%s273] sm:$0xf]
      %v281 = vld [vmem:[%s273 + $0x4] sm:$0xf]
      %v282 = vld [vmem:[%s273 + $0x8] sm:$0xf]
      %v283 = vld [vmem:[%s273 + $0xc] sm:$0xf]
      %v284 = vld [vmem:[%s273 + $0x10] sm:$0xf]
      %v285 = vld [vmem:[%s273 + $0x14] sm:$0xf]
      %v286 = vld [vmem:[%s273 + $0x18] sm:$0xf]
      %v287 = vld [vmem:[%s273 + $0x1c] sm:$0xf]
      %v288 = vld [vmem:[%s1] sm:$0xf]
      %v289 = vld [vmem:[%s1 + $0x4] sm:$0xf]
      %v290 = vld [vmem:[%s2] sm:$0x1]
      %v292 = vlaneseq
      %v293 = vshrl.u32 %v292, 7
      %v294 = vsub.s32 0, %v293
      %v295 = vrot.slane %v290, %v294
      %v305 = vunpack.c.l.b16 %v280
      %v306 = vunpack.c.l.b16 %v281
      %v307 = vunpack.c.l.b16 %v282
      %v308 = vunpack.c.l.b16 %v283
      %v309 = vunpack.c.l.b16 %v284
      %v310 = vunpack.c.l.b16 %v285
      %v311 = vunpack.c.l.b16 %v286
      %v312 = vunpack.c.l.b16 %v287
      %v313 = vpack.c.b16 %v306, %v305
      %v314 = vpack.c.b16 %v308, %v307
      %v315 = vpack.c.b16 %v310, %v309
      %v316 = vpack.c.b16 %v312, %v311
      %v319 = vunpack.c.l.b16 %v288
      %v320 = vunpack.c.l.b16 %v289
      %v321 = vpack.c.b16 %v320, %v319
      %vm323 = vcmask 130048
      %v325 = vsel %vm323, %v313, 0
      %v328 = vsel %vm323, %v314, 0
      %v331 = vsel %vm323, %v315, 0
      %v334 = vsel %vm323, %v316, 0
      %336 = vmatprep.subr.bf16.mxu0 0
      %337 = vmatpush1.bf16.msra.mxu0 0
      %338 = vmatprep.subr.bf16.mxu0 0
      %339 = vmatpush1.bf16.msra.mxu0 0
      %340 = vmatprep.subr.bf16.mxu0 0
      %341 = vmatpush1.bf16.msra.mxu0 0
      %342 = vmatprep.subr.bf16.mxu0 0
      %343 = vmatpush1.bf16.msra.mxu0 0
      %344 = vmatprep.subr.bf16.mxu0 0
      %345 = vmatpush1.bf16.msra.mxu0 0
      %346 = vmatprep.subr.bf16.mxu0 0
      %347 = vmatpush1.bf16.msra.mxu0 0
      %348 = vmatprep.subr.bf16.mxu0 0
      %349 = vmatpush1.bf16.msra.mxu0 0
      %350 = vmatprep.subr.bf16.mxu0 0
      %351 = vmatpush1.bf16.msra.mxu0 %v321
      %352 = vmatprep.subr.bf16.mxu0 0
      %353 = vmatpush2.bf16.msra.mxu0 0
      %354 = vmatprep.subr.bf16.mxu0 0
      %355 = vmatpush2.bf16.msra.mxu0 0
      %356 = vmatprep.subr.bf16.mxu0 0
      %357 = vmatpush2.bf16.msra.mxu0 0
      %358 = vmatprep.subr.bf16.mxu0 0
      %359 = vmatpush2.bf16.msra.mxu0 0
      %360 = vmatprep.subr.bf16.mxu0 0
      %361 = vmatpush2.bf16.msra.mxu0 0
      %362 = vmatprep.subr.bf16.mxu0 0
      %363 = vmatpush2.bf16.msra.mxu0 0
      %364 = vmatprep.subr.bf16.mxu0 0
      %365 = vmatpush2.bf16.msra.mxu0 0
      %366 = vmatprep.subr.bf16.mxu0 0
      %367 = vmatpush2.bf16.msra.mxu0 0
      %368 = vmatprep.mubr.bf16.mxu0 0
      %369 = vmatmul.mubr.bf16.gmra.mxu0 %v325
      %v370 = vpop.f32.mrf.mxu0
      %v371 = vadd.f32 %v295, %v370
      %v372 = vpop.f32.mrf.mxu0
      %v373 = vpop.f32.mrf.mxu0
      %v374 = vadd.f32 %v295, %v373
      %v375 = vpop.f32.mrf.mxu0
      %376 = vmatprep.mubr.bf16.mxu0 0
      %377 = vmatmul.mubr.bf16.gmra.mxu0 %v328
      %v378 = vpop.f32.mrf.mxu0
      %v379 = vadd.f32 %v295, %v378
      %v380 = vpop.f32.mrf.mxu0
      %v381 = vpop.f32.mrf.mxu0
      %v382 = vadd.f32 %v295, %v381
      %v383 = vpop.f32.mrf.mxu0
      %384 = vmatprep.mubr.bf16.mxu0 0
      %385 = vmatmul.mubr.bf16.gmra.mxu0 %v331
      %v386 = vpop.f32.mrf.mxu0
      %v387 = vadd.f32 %v295, %v386
      %v388 = vpop.f32.mrf.mxu0
      %v389 = vpop.f32.mrf.mxu0
      %v390 = vadd.f32 %v295, %v389
      %v391 = vpop.f32.mrf.mxu0
      %392 = vmatprep.mubr.bf16.mxu0 0
      %393 = vmatmul.mubr.bf16.gmra.mxu0 %v334
      %v394 = vpop.f32.mrf.mxu0
      %v395 = vadd.f32 %v295, %v394
      %v396 = vpop.f32.mrf.mxu0
      %v397 = vpop.f32.mrf.mxu0
      %v398 = vadd.f32 %v295, %v397
      %v399 = vpop.f32.mrf.mxu0
      %400 = vdwg.mxu0
      %v401 = vmax.f32 %v371, 0.0
      %v402 = vmax.f32 %v374, 0.0
      %v403 = vmax.f32 %v379, 0.0
      %v404 = vmax.f32 %v382, 0.0
      %v405 = vmax.f32 %v387, 0.0
      %v406 = vmax.f32 %v390, 0.0
      %v407 = vmax.f32 %v395, 0.0
      %v408 = vmax.f32 %v398, 0.0
      %v409 = vlaneseq
      %v410 = vshrl.u32 %v409, 7
      %v411 = vadd.s32 %v410, 8
      %v412 = vadd.s32 %v410, 16
      %v413 = vadd.s32 %v410, 24
      %v414 = vadd.s32 %v410, 32
      %v415 = vadd.s32 %v410, 40
      %v416 = vadd.s32 %v410, 48
      %v417 = vadd.s32 %v410, 56
      %vm418 = vcmp.lt.s32.totalorder %v410, 0
      %v419 = vsub.s32 0, %v410
      %v420 = vsel %vm418, %v419, %v410
      %v421 = vshrl.u32 %v420, 3
      %v422 = vand.u32 %v420, 7
      %v423 = vsub.s32 0, %v422
      %v424 = vsel %vm418, %v423, %v422
      %vm425 = vcmp.lt.s32.totalorder %v411, 0
      %v426 = vsub.s32 0, %v411
      %v427 = vsel %vm425, %v426, %v411
      %v428 = vshrl.u32 %v427, 3
      %v429 = vand.u32 %v427, 7
      %v430 = vsub.s32 0, %v429
      %v431 = vsel %vm425, %v430, %v429
      %vm432 = vcmp.lt.s32.totalorder %v412, 0
      %v433 = vsub.s32 0, %v412
      %v434 = vsel %vm432, %v433, %v412
      %v435 = vshrl.u32 %v434, 3
      %v436 = vand.u32 %v434, 7
      %v437 = vsub.s32 0, %v436
      %v438 = vsel %vm432, %v437, %v436
      %vm439 = vcmp.lt.s32.totalorder %v413, 0
      %v440 = vsub.s32 0, %v413
      %v441 = vsel %vm439, %v440, %v413
      %v442 = vshrl.u32 %v441, 3
      %v443 = vand.u32 %v441, 7
      %v444 = vsub.s32 0, %v443
      %v445 = vsel %vm439, %v444, %v443
      %vm446 = vcmp.lt.s32.totalorder %v414, 0
      %v447 = vsub.s32 0, %v414
      %v448 = vsel %vm446, %v447, %v414
      %v449 = vshrl.u32 %v448, 3
      %v450 = vand.u32 %v448, 7
      %v451 = vsub.s32 0, %v450
      %v452 = vsel %vm446, %v451, %v450
      %vm453 = vcmp.lt.s32.totalorder %v415, 0
      %v454 = vsub.s32 0, %v415
      %v455 = vsel %vm453, %v454, %v415
      %v456 = vshrl.u32 %v455, 3
      %v457 = vand.u32 %v455, 7
      %v458 = vsub.s32 0, %v457
      %v459 = vsel %vm453, %v458, %v457
      %vm460 = vcmp.lt.s32.totalorder %v416, 0
      %v461 = vsub.s32 0, %v416
      %v462 = vsel %vm460, %v461, %v416
      %v463 = vshrl.u32 %v462, 3
      %v464 = vand.u32 %v462, 7
      %v465 = vsub.s32 0, %v464
      %v466 = vsel %vm460, %v465, %v464
      %vm467 = vcmp.lt.s32.totalorder %v417, 0
      %v468 = vsub.s32 0, %v417
      %v469 = vsel %vm467, %v468, %v417
      %v470 = vshrl.u32 %v469, 3
      %v471 = vand.u32 %v469, 7
      %v472 = vsub.s32 0, %v471
      %v473 = vsel %vm467, %v472, %v471
      %vm474 = vcmp.ne.s32.totalorder %v424, 0
      %vm475 = vcmp.ne.s32.totalorder %v431, 0
      %vm476 = vcmp.ne.s32.totalorder %v438, 0
      %vm477 = vcmp.ne.s32.totalorder %v445, 0
      %vm478 = vcmp.ne.s32.totalorder %v452, 0
      %vm479 = vcmp.ne.s32.totalorder %v459, 0
      %vm480 = vcmp.ne.s32.totalorder %v466, 0
      %vm481 = vcmp.ne.s32.totalorder %v473, 0
      %vm482 = vcmp.lt.s32.totalorder %v424, 0
      %vm483 = vcmp.lt.s32.totalorder %v431, 0
      %vm484 = vcmp.lt.s32.totalorder %v438, 0
      %vm485 = vcmp.lt.s32.totalorder %v445, 0
      %vm486 = vcmp.lt.s32.totalorder %v452, 0
      %vm487 = vcmp.lt.s32.totalorder %v459, 0
      %vm488 = vcmp.lt.s32.totalorder %v466, 0
      %vm489 = vcmp.lt.s32.totalorder %v473, 0
      %vm490 = vmand %vm482, %vm474
      %vm491 = vmand %vm483, %vm475
      %vm492 = vmand %vm484, %vm476
      %vm493 = vmand %vm485, %vm477
      %vm494 = vmand %vm486, %vm478
      %vm495 = vmand %vm487, %vm479
      %vm496 = vmand %vm488, %vm480
      %vm497 = vmand %vm489, %vm481
      %v498 = vadd.s32 %v424, 8
      %v499 = vadd.s32 %v431, 8
      %v500 = vadd.s32 %v438, 8
      %v501 = vadd.s32 %v445, 8
      %v502 = vadd.s32 %v452, 8
      %v503 = vadd.s32 %v459, 8
      %v504 = vadd.s32 %v466, 8
      %v505 = vadd.s32 %v473, 8
      %v506 = vsel %vm490, %v498, %v424
      %v507 = vsel %vm491, %v499, %v431
      %v508 = vsel %vm492, %v500, %v438
      %v509 = vsel %vm493, %v501, %v445
      %v510 = vsel %vm494, %v502, %v452
      %v511 = vsel %vm495, %v503, %v459
      %v512 = vsel %vm496, %v504, %v466
      %v513 = vsel %vm497, %v505, %v473
      %vm514 = vcmp.ge.s32.totalorder %v506, 1
      %vm515 = vcmp.ge.s32.totalorder %v507, 1
      %vm516 = vcmp.ge.s32.totalorder %v508, 1
      %vm517 = vcmp.ge.s32.totalorder %v509, 1
      %vm518 = vcmp.ge.s32.totalorder %v510, 1
      %vm519 = vcmp.ge.s32.totalorder %v511, 1
      %vm520 = vcmp.ge.s32.totalorder %v512, 1
      %vm521 = vcmp.ge.s32.totalorder %v513, 1
      %vm522 = vcmp.le.s32.totalorder %v506, 6
      %vm523 = vcmp.le.s32.totalorder %v507, 6
      %vm524 = vcmp.le.s32.totalorder %v508, 6
      %vm525 = vcmp.le.s32.totalorder %v509, 6
      %vm526 = vcmp.le.s32.totalorder %v510, 6
      %vm527 = vcmp.le.s32.totalorder %v511, 6
      %vm528 = vcmp.le.s32.totalorder %v512, 6
      %vm529 = vcmp.le.s32.totalorder %v513, 6
      %vm530 = vcmp.ge.s32.totalorder %v410, 8
      %vm531 = vcmp.ge.s32.totalorder %v411, 8
      %vm532 = vcmp.ge.s32.totalorder %v412, 8
      %vm533 = vcmp.ge.s32.totalorder %v413, 8
      %vm534 = vcmp.ge.s32.totalorder %v414, 8
      %vm535 = vcmp.ge.s32.totalorder %v415, 8
      %vm536 = vcmp.ge.s32.totalorder %v416, 8
      %vm537 = vcmp.ge.s32.totalorder %v417, 8
      %vm538 = vcmp.lt.s32.totalorder %v410, 56
      %vm539 = vcmp.lt.s32.totalorder %v411, 56
      %vm540 = vcmp.lt.s32.totalorder %v412, 56
      %vm541 = vcmp.lt.s32.totalorder %v413, 56
      %vm542 = vcmp.lt.s32.totalorder %v414, 56
      %vm543 = vcmp.lt.s32.totalorder %v415, 56
      %vm544 = vcmp.lt.s32.totalorder %v416, 56
      %vm545 = vcmp.lt.s32.totalorder %v417, 56
      %v546 = vrot.slane %v401, 7
      %v547 = vrot.slane %v402, 7
      %v548 = vrot.slane %v403, 7
      %v549 = vrot.slane %v404, 7
      %v550 = vrot.slane %v405, 7
      %v551 = vrot.slane %v406, 7
      %v552 = vrot.slane %v407, 7
      %v553 = vrot.slane %v408, 7
      %vm554 = vcmp.lt.s32.totalorder %v410, 1
      %v555 = vsel %vm554, %v552, %v553
      %v556 = vsel %vm554, %v551, %v552
      %v557 = vsel %vm554, %v550, %v551
      %v558 = vsel %vm554, %v549, %v550
      %v559 = vsel %vm554, %v548, %v549
      %v560 = vsel %vm554, %v547, %v548
      %v561 = vsel %vm554, %v546, %v547
      %v562 = vsel %vm554, %v553, %v546
      %v563 = vsel %vm514, 1, 0
      %v564 = vsel %vm515, 1, 0
      %v565 = vsel %vm516, 1, 0
      %v566 = vsel %vm517, 1, 0
      %v567 = vsel %vm518, 1, 0
      %v568 = vsel %vm519, 1, 0
      %v569 = vsel %vm520, 1, 0
      %v570 = vsel %vm521, 1, 0
      %vm571 = vcmp.eq.s32.totalorder %v563, 1
      %vm572 = vcmp.eq.s32.totalorder %v564, 1
      %vm573 = vcmp.eq.s32.totalorder %v565, 1
      %vm574 = vcmp.eq.s32.totalorder %v566, 1
      %vm575 = vcmp.eq.s32.totalorder %v567, 1
      %vm576 = vcmp.eq.s32.totalorder %v568, 1
      %vm577 = vcmp.eq.s32.totalorder %v569, 1
      %vm578 = vcmp.eq.s32.totalorder %v570, 1
      %v579 = vsel %vm571, %v562, 0.0
      %v580 = vsel %vm572, %v561, 0.0
      %v581 = vsel %vm573, %v560, 0.0
      %v582 = vsel %vm574, %v559, 0.0
      %v583 = vsel %vm575, %v558, 0.0
      %v584 = vsel %vm576, %v557, 0.0
      %v585 = vsel %vm577, %v556, 0.0
      %v586 = vsel %vm578, %v555, 0.0
      %v587 = vrot.slane %v401, 1
      %v588 = vrot.slane %v402, 1
      %v589 = vrot.slane %v403, 1
      %v590 = vrot.slane %v404, 1
      %v591 = vrot.slane %v405, 1
      %v592 = vrot.slane %v406, 1
      %v593 = vrot.slane %v407, 1
      %v594 = vrot.slane %v408, 1
      %vm595 = vcmp.lt.s32.totalorder %v410, 7
      %v596 = vsel %vm595, %v593, %v594
      %v597 = vsel %vm595, %v592, %v593
      %v598 = vsel %vm595, %v591, %v592
      %v599 = vsel %vm595, %v590, %v591
      %v600 = vsel %vm595, %v589, %v590
      %v601 = vsel %vm595, %v588, %v589
      %v602 = vsel %vm595, %v587, %v588
      %v603 = vsel %vm595, %v594, %v587
      %v604 = vsel %vm522, 1, 0
      %v605 = vsel %vm523, 1, 0
      %v606 = vsel %vm524, 1, 0
      %v607 = vsel %vm525, 1, 0
      %v608 = vsel %vm526, 1, 0
      %v609 = vsel %vm527, 1, 0
      %v610 = vsel %vm528, 1, 0
      %v611 = vsel %vm529, 1, 0
      %vm612 = vcmp.eq.s32.totalorder %v604, 1
      %vm613 = vcmp.eq.s32.totalorder %v605, 1
      %vm614 = vcmp.eq.s32.totalorder %v606, 1
      %vm615 = vcmp.eq.s32.totalorder %v607, 1
      %vm616 = vcmp.eq.s32.totalorder %v608, 1
      %vm617 = vcmp.eq.s32.totalorder %v609, 1
      %vm618 = vcmp.eq.s32.totalorder %v610, 1
      %vm619 = vcmp.eq.s32.totalorder %v611, 1
      %v620 = vsel %vm612, %v602, 0.0
      %v621 = vsel %vm613, %v601, 0.0
      %v622 = vsel %vm614, %v600, 0.0
      %v623 = vsel %vm615, %v599, 0.0
      %v624 = vsel %vm616, %v598, 0.0
      %v625 = vsel %vm617, %v597, 0.0
      %v626 = vsel %vm618, %v596, 0.0
      %v627 = vsel %vm619, %v603, 0.0
      %v628 = vsel %vm530, 1, 0
      %v629 = vsel %vm531, 1, 0
      %v630 = vsel %vm532, 1, 0
      %v631 = vsel %vm533, 1, 0
      %v632 = vsel %vm534, 1, 0
      %v633 = vsel %vm535, 1, 0
      %v634 = vsel %vm536, 1, 0
      %v635 = vsel %vm537, 1, 0
      %vm636 = vcmp.eq.s32.totalorder %v628, 1
      %vm637 = vcmp.eq.s32.totalorder %v629, 1
      %vm638 = vcmp.eq.s32.totalorder %v630, 1
      %vm639 = vcmp.eq.s32.totalorder %v631, 1
      %vm640 = vcmp.eq.s32.totalorder %v632, 1
      %vm641 = vcmp.eq.s32.totalorder %v633, 1
      %vm642 = vcmp.eq.s32.totalorder %v634, 1
      %vm643 = vcmp.eq.s32.totalorder %v635, 1
      %v644 = vsel %vm636, %v586, 0.0
      %v645 = vsel %vm637, %v579, 0.0
      %v646 = vsel %vm638, %v580, 0.0
      %v647 = vsel %vm639, %v581, 0.0
      %v648 = vsel %vm640, %v582, 0.0
      %v649 = vsel %vm641, %v583, 0.0
      %v650 = vsel %vm642, %v584, 0.0
      %v651 = vsel %vm643, %v585, 0.0
      %v652 = vpack.c.bf16 %v645, %v644
      %v653 = vpack.c.bf16 %v647, %v646
      %v654 = vpack.c.bf16 %v649, %v648
      %v655 = vpack.c.bf16 %v651, %v650
      %v656 = vsel %vm636, %v408, 0.0
      %v657 = vsel %vm637, %v401, 0.0
      %v658 = vsel %vm638, %v402, 0.0
      %v659 = vsel %vm639, %v403, 0.0
      %v660 = vsel %vm640, %v404, 0.0
      %v661 = vsel %vm641, %v405, 0.0
      %v662 = vsel %vm642, %v406, 0.0
      %v663 = vsel %vm643, %v407, 0.0
      %v664 = vpack.c.bf16 %v657, %v656
      %v665 = vpack.c.bf16 %v659, %v658
      %v666 = vpack.c.bf16 %v661, %v660
      %v667 = vpack.c.bf16 %v663, %v662
      %v668 = vsel %vm636, %v627, 0.0
      %v669 = vsel %vm637, %v620, 0.0
      %v670 = vsel %vm638, %v621, 0.0
      %v671 = vsel %vm639, %v622, 0.0
      %v672 = vsel %vm640, %v623, 0.0
      %v673 = vsel %vm641, %v624, 0.0
      %v674 = vsel %vm642, %v625, 0.0
      %v675 = vsel %vm643, %v626, 0.0
      %v676 = vpack.c.bf16 %v669, %v668
      %v677 = vpack.c.bf16 %v671, %v670
      %v678 = vpack.c.bf16 %v673, %v672
      %v679 = vpack.c.bf16 %v675, %v674
      %v680 = vpack.c.bf16 %v580, %v579
      %v681 = vpack.c.bf16 %v582, %v581
      %v682 = vpack.c.bf16 %v584, %v583
      %v683 = vpack.c.bf16 %v586, %v585
      %v684 = vpack.c.bf16 %v402, %v401
      %v685 = vpack.c.bf16 %v404, %v403
      %v686 = vpack.c.bf16 %v406, %v405
      %v687 = vpack.c.bf16 %v408, %v407
      %v688 = vpack.c.bf16 %v621, %v620
      %v689 = vpack.c.bf16 %v623, %v622
      %v690 = vpack.c.bf16 %v625, %v624
      %v691 = vpack.c.bf16 %v627, %v626
      %v692 = vsel %vm538, 1, 0
      %v693 = vsel %vm539, 1, 0
      %v694 = vsel %vm540, 1, 0
      %v695 = vsel %vm541, 1, 0
      %v696 = vsel %vm542, 1, 0
      %v697 = vsel %vm543, 1, 0
      %v698 = vsel %vm544, 1, 0
      %v699 = vsel %vm545, 1, 0
      %vm700 = vcmp.eq.s32.totalorder %v692, 1
      %vm701 = vcmp.eq.s32.totalorder %v693, 1
      %vm702 = vcmp.eq.s32.totalorder %v694, 1
      %vm703 = vcmp.eq.s32.totalorder %v695, 1
      %vm704 = vcmp.eq.s32.totalorder %v696, 1
      %vm705 = vcmp.eq.s32.totalorder %v697, 1
      %vm706 = vcmp.eq.s32.totalorder %v698, 1
      %vm707 = vcmp.eq.s32.totalorder %v699, 1
      %v708 = vsel %vm700, %v580, 0.0
      %v709 = vsel %vm701, %v581, 0.0
      %v710 = vsel %vm702, %v582, 0.0
      %v711 = vsel %vm703, %v583, 0.0
      %v712 = vsel %vm704, %v584, 0.0
      %v713 = vsel %vm705, %v585, 0.0
      %v714 = vsel %vm706, %v586, 0.0
      %v715 = vsel %vm707, %v579, 0.0
      %v716 = vpack.c.bf16 %v709, %v708
      %v717 = vpack.c.bf16 %v711, %v710
      %v718 = vpack.c.bf16 %v713, %v712
      %v719 = vpack.c.bf16 %v715, %v714
      %v720 = vsel %vm700, %v402, 0.0
      %v721 = vsel %vm701, %v403, 0.0
      %v722 = vsel %vm702, %v404, 0.0
      %v723 = vsel %vm703, %v405, 0.0
      %v724 = vsel %vm704, %v406, 0.0
      %v725 = vsel %vm705, %v407, 0.0
      %v726 = vsel %vm706, %v408, 0.0
      %v727 = vsel %vm707, %v401, 0.0
      %v728 = vpack.c.bf16 %v721, %v720
      %v729 = vpack.c.bf16 %v723, %v722
      %v730 = vpack.c.bf16 %v725, %v724
      %v731 = vpack.c.bf16 %v727, %v726
      %v732 = vsel %vm700, %v621, 0.0
      %v733 = vsel %vm701, %v622, 0.0
      %v734 = vsel %vm702, %v623, 0.0
      %v735 = vsel %vm703, %v624, 0.0
      %v736 = vsel %vm704, %v625, 0.0
      %v737 = vsel %vm705, %v626, 0.0
      %v738 = vsel %vm706, %v627, 0.0
      %v739 = vsel %vm707, %v620, 0.0
      %v740 = vpack.c.bf16 %v733, %v732
      %v741 = vpack.c.bf16 %v735, %v734
      %v742 = vpack.c.bf16 %v737, %v736
      %v743 = vpack.c.bf16 %v739, %v738
      %748 = vrot.lane.b32.xlu0 %v664, 4
      %v749 = vpop.permute.xlu0 %748
      %750 = vrot.lane.b32.xlu0 %v665, 4
      %v751 = vpop.permute.xlu0 %750
      %752 = vrot.lane.b32.xlu0 %v666, 4
      %v753 = vpop.permute.xlu0 %752
      %754 = vrot.lane.b32.xlu0 %v667, 4
      %v755 = vpop.permute.xlu0 %754
      %760 = vrot.lane.b32.xlu0 %v676, 8
      %v761 = vpop.permute.xlu0 %760
      %762 = vrot.lane.b32.xlu0 %v677, 8
      %v763 = vpop.permute.xlu0 %762
      %764 = vrot.lane.b32.xlu0 %v678, 8
      %v765 = vpop.permute.xlu0 %764
      %766 = vrot.lane.b32.xlu0 %v679, 8
      %v767 = vpop.permute.xlu0 %766
      %772 = vrot.lane.b32.xlu0 %v680, 12
      %v773 = vpop.permute.xlu0 %772
      %774 = vrot.lane.b32.xlu0 %v681, 12
      %v775 = vpop.permute.xlu0 %774
      %776 = vrot.lane.b32.xlu0 %v682, 12
      %v777 = vpop.permute.xlu0 %776
      %778 = vrot.lane.b32.xlu0 %v683, 12
      %v779 = vpop.permute.xlu0 %778
      %784 = vrot.lane.b32.xlu0 %v684, 16
      %v785 = vpop.permute.xlu0 %784
      %786 = vrot.lane.b32.xlu0 %v685, 16
      %v787 = vpop.permute.xlu0 %786
      %788 = vrot.lane.b32.xlu0 %v686, 16
      %v789 = vpop.permute.xlu0 %788
      %790 = vrot.lane.b32.xlu0 %v687, 16
      %v791 = vpop.permute.xlu0 %790
      %796 = vrot.lane.b32.xlu0 %v688, 20
      %v797 = vpop.permute.xlu0 %796
      %798 = vrot.lane.b32.xlu0 %v689, 20
      %v799 = vpop.permute.xlu0 %798
      %800 = vrot.lane.b32.xlu0 %v690, 20
      %v801 = vpop.permute.xlu0 %800
      %802 = vrot.lane.b32.xlu0 %v691, 20
      %v803 = vpop.permute.xlu0 %802
      %808 = vrot.lane.b32.xlu0 %v716, 24
      %v809 = vpop.permute.xlu0 %808
      %810 = vrot.lane.b32.xlu0 %v717, 24
      %v811 = vpop.permute.xlu0 %810
      %812 = vrot.lane.b32.xlu0 %v718, 24
      %v813 = vpop.permute.xlu0 %812
      %814 = vrot.lane.b32.xlu0 %v719, 24
      %v815 = vpop.permute.xlu0 %814
      %820 = vrot.lane.b32.xlu0 %v728, 28
      %v821 = vpop.permute.xlu0 %820
      %822 = vrot.lane.b32.xlu0 %v729, 28
      %v823 = vpop.permute.xlu0 %822
      %824 = vrot.lane.b32.xlu0 %v730, 28
      %v825 = vpop.permute.xlu0 %824
      %826 = vrot.lane.b32.xlu0 %v731, 28
      %v827 = vpop.permute.xlu0 %826
      %832 = vrot.lane.b32.xlu0 %v740, 32
      %v833 = vpop.permute.xlu0 %832
      %834 = vrot.lane.b32.xlu0 %v741, 32
      %v835 = vpop.permute.xlu0 %834
      %836 = vrot.lane.b32.xlu0 %v742, 32
      %v837 = vpop.permute.xlu0 %836
      %838 = vrot.lane.b32.xlu0 %v743, 32
      %v839 = vpop.permute.xlu0 %838
      %vm840 = vcmask 31744
      %v843 = vsel %vm840, %v652, %v749
      %v846 = vsel %vm840, %v653, %v751
      %v849 = vsel %vm840, %v654, %v753
      %v852 = vsel %vm840, %v655, %v755
      %vm853 = vcmask 64512
      %v855 = vsel %vm853, %v843, %v761
      %v857 = vsel %vm853, %v846, %v763
      %v859 = vsel %vm853, %v849, %v765
      %v861 = vsel %vm853, %v852, %v767
      %vm862 = vcmask 97280
      %v864 = vsel %vm862, %v855, %v773
      %v866 = vsel %vm862, %v857, %v775
      %v868 = vsel %vm862, %v859, %v777
      %v870 = vsel %vm862, %v861, %v779
      %v872 = vsel %vm323, %v864, %v785
      %v874 = vsel %vm323, %v866, %v787
      %v876 = vsel %vm323, %v868, %v789
      %v878 = vsel %vm323, %v870, %v791
      %vm879 = vcmask 162816
      %v881 = vsel %vm879, %v872, %v797
      %v883 = vsel %vm879, %v874, %v799
      %v885 = vsel %vm879, %v876, %v801
      %v887 = vsel %vm879, %v878, %v803
      %vm888 = vcmask 195584
      %v890 = vsel %vm888, %v881, %v809
      %v892 = vsel %vm888, %v883, %v811
      %v894 = vsel %vm888, %v885, %v813
      %v896 = vsel %vm888, %v887, %v815
      %vm897 = vcmask 228352
      %v899 = vsel %vm897, %v890, %v821
      %v901 = vsel %vm897, %v892, %v823
      %v903 = vsel %vm897, %v894, %v825
      %v905 = vsel %vm897, %v896, %v827
      %vm906 = vcmask 261120
      %v908 = vsel %vm906, %v899, %v833
      %v910 = vsel %vm906, %v901, %v835
      %v912 = vsel %vm906, %v903, %v837
      %v914 = vsel %vm906, %v905, %v839
      %v915 = vld [vmem:[%s3] sm:$0xf]
      %v916 = vld [vmem:[%s3 + $0x4] sm:$0xf]
      %v917 = vld [vmem:[%s3 + $0x8] sm:$0xf]
      %v918 = vld [vmem:[%s3 + $0xc] sm:$0xf]
      %v919 = vld [vmem:[%s3 + $0x10] sm:$0x3]
      %v920 = vld [vmem:[%s4] sm:$0x1]
      %v922 = vlaneseq
      %v923 = vshrl.u32 %v922, 7
      %v924 = vsub.s32 0, %v923
      %v925 = vrot.slane %v920, %v924
      %v932 = vunpack.c.l.b16 %v915
      %v933 = vunpack.c.l.b16 %v916
      %v934 = vunpack.c.l.b16 %v917
      %v935 = vunpack.c.l.b16 %v918
      %v936 = vunpack.c.l.b16 %v919
      %v937 = vpack.c.b16 %v933, %v932
      %v938 = vpack.c.b16 %v935, %v934
      %v939 = vpack.c.b16 %v936, %v936
      %vm942 = vcmask 293888
      %v943 = vsel %vm942, %v908, 0
      %v945 = vsel %vm942, %v910, 0
      %v947 = vsel %vm942, %v912, 0
      %v949 = vsel %vm942, %v914, 0
      %vm951 = vcmask 1041408
      %v953 = vsel %vm951, %v939, 0
      %955 = vmatprep.subr.bf16.mxu0 0
      %956 = vmatpush1.bf16.msra.mxu0 0
      %957 = vmatprep.subr.bf16.mxu0 0
      %958 = vmatpush1.bf16.msra.mxu0 0
      %959 = vmatprep.subr.bf16.mxu0 0
      %960 = vmatpush1.bf16.msra.mxu0 0
      %961 = vmatprep.subr.bf16.mxu0 0
      %962 = vmatpush1.bf16.msra.mxu0 0
      %963 = vmatprep.subr.bf16.mxu0 0
      %964 = vmatpush1.bf16.msra.mxu0 0
      %965 = vmatprep.subr.bf16.mxu0 0
      %966 = vmatpush1.bf16.msra.mxu0 %v953
      %967 = vmatprep.subr.bf16.mxu0 0
      %968 = vmatpush1.bf16.msra.mxu0 %v938
      %969 = vmatprep.subr.bf16.mxu0 0
      %970 = vmatpush1.bf16.msra.mxu0 %v937
      %971 = vmatprep.subr.bf16.mxu0 0
      %972 = vmatpush2.bf16.msra.mxu0 0
      %973 = vmatprep.subr.bf16.mxu0 0
      %974 = vmatpush2.bf16.msra.mxu0 0
      %975 = vmatprep.subr.bf16.mxu0 0
      %976 = vmatpush2.bf16.msra.mxu0 0
      %977 = vmatprep.subr.bf16.mxu0 0
      %978 = vmatpush2.bf16.msra.mxu0 0
      %979 = vmatprep.subr.bf16.mxu0 0
      %980 = vmatpush2.bf16.msra.mxu0 0
      %981 = vmatprep.subr.bf16.mxu0 0
      %982 = vmatpush2.bf16.msra.mxu0 0
      %983 = vmatprep.subr.bf16.mxu0 0
      %984 = vmatpush2.bf16.msra.mxu0 0
      %985 = vmatprep.subr.bf16.mxu0 0
      %986 = vmatpush2.bf16.msra.mxu0 0
      %987 = vmatprep.mubr.bf16.mxu0 0
      %988 = vmatmul.mubr.bf16.gmra.mxu0 %v943
      %v989 = vpop.f32.mrf.mxu0
      %v990 = vadd.f32 %v925, %v989
      %v991 = vpop.f32.mrf.mxu0
      %v992 = vpop.f32.mrf.mxu0
      %v993 = vadd.f32 %v925, %v992
      %v994 = vpop.f32.mrf.mxu0
      %995 = vmatprep.mubr.bf16.mxu0 0
      %996 = vmatmul.mubr.bf16.gmra.mxu0 %v945
      %v997 = vpop.f32.mrf.mxu0
      %v998 = vadd.f32 %v925, %v997
      %v999 = vpop.f32.mrf.mxu0
      %v1000 = vpop.f32.mrf.mxu0
      %v1001 = vadd.f32 %v925, %v1000
      %v1002 = vpop.f32.mrf.mxu0
      %1003 = vmatprep.mubr.bf16.mxu0 0
      %1004 = vmatmul.mubr.bf16.gmra.mxu0 %v947
      %v1005 = vpop.f32.mrf.mxu0
      %v1006 = vadd.f32 %v925, %v1005
      %v1007 = vpop.f32.mrf.mxu0
      %v1008 = vpop.f32.mrf.mxu0
      %v1009 = vadd.f32 %v925, %v1008
      %v1010 = vpop.f32.mrf.mxu0
      %1011 = vmatprep.mubr.bf16.mxu0 0
      %1012 = vmatmul.mubr.bf16.gmra.mxu0 %v949
      %v1013 = vpop.f32.mrf.mxu0
      %v1014 = vadd.f32 %v925, %v1013
      %v1015 = vpop.f32.mrf.mxu0
      %v1016 = vpop.f32.mrf.mxu0
      %v1017 = vadd.f32 %v925, %v1016
      %v1018 = vpop.f32.mrf.mxu0
      %1019 = vdwg.mxu0
      %v1020 = vmax.f32 %v990, 0.0
      %v1021 = vmax.f32 %v993, 0.0
      %v1022 = vmax.f32 %v998, 0.0
      %v1023 = vmax.f32 %v1001, 0.0
      %v1024 = vmax.f32 %v1006, 0.0
      %v1025 = vmax.f32 %v1009, 0.0
      %v1026 = vmax.f32 %v1014, 0.0
      %v1027 = vmax.f32 %v1017, 0.0
      %v1028 = vpack.c.bf16 %v1021, %v1020
      %v1029 = vpack.c.bf16 %v1023, %v1022
      %v1030 = vpack.c.bf16 %v1025, %v1024
      %v1031 = vpack.c.bf16 %v1027, %v1026
      %v1032 = vld [vmem:[%s5] sm:$0x3]
      %v1033 = vld [vmem:[%s6] sm:$0x1]
      %v1035 = vlaneseq
      %v1036 = vshrl.u32 %v1035, 7
      %v1037 = vsub.s32 0, %v1036
      %v1038 = vrot.slane %v1033, %v1037
      %v1041 = vsel %vm840, %v1028, 0
      %v1044 = vsel %vm840, %v1029, 0
      %v1047 = vsel %vm840, %v1030, 0
      %v1050 = vsel %vm840, %v1031, 0
      %v1053 = vsel %vm951, %v1032, 0
      %1055 = vmatprep.subr.bf16.mxu0 0
      %1056 = vmatpush1.bf16.msra.mxu0 0
      %1057 = vmatprep.subr.bf16.mxu0 0
      %1058 = vmatpush1.bf16.msra.mxu0 0
      %1059 = vmatprep.subr.bf16.mxu0 0
      %1060 = vmatpush1.bf16.msra.mxu0 0
      %1061 = vmatprep.subr.bf16.mxu0 0
      %1062 = vmatpush1.bf16.msra.mxu0 0
      %1063 = vmatprep.subr.bf16.mxu0 0
      %1064 = vmatpush1.bf16.msra.mxu0 0
      %1065 = vmatprep.subr.bf16.mxu0 0
      %1066 = vmatpush1.bf16.msra.mxu0 0
      %1067 = vmatprep.subr.bf16.mxu0 0
      %1068 = vmatpush1.bf16.msra.mxu0 0
      %1069 = vmatprep.subr.bf16.mxu0 0
      %1070 = vmatpush1.bf16.msra.mxu0 %v1053
      %1071 = vmatprep.subr.bf16.mxu0 0
      %1072 = vmatpush2.bf16.msra.mxu0 0
      %1073 = vmatprep.subr.bf16.mxu0 0
      %1074 = vmatpush2.bf16.msra.mxu0 0
      %1075 = vmatprep.subr.bf16.mxu0 0
      %1076 = vmatpush2.bf16.msra.mxu0 0
      %1077 = vmatprep.subr.bf16.mxu0 0
      %1078 = vmatpush2.bf16.msra.mxu0 0
      %1079 = vmatprep.subr.bf16.mxu0 0
      %1080 = vmatpush2.bf16.msra.mxu0 0
      %1081 = vmatprep.subr.bf16.mxu0 0
      %1082 = vmatpush2.bf16.msra.mxu0 0
      %1083 = vmatprep.subr.bf16.mxu0 0
      %1084 = vmatpush2.bf16.msra.mxu0 0
      %1085 = vmatprep.subr.bf16.mxu0 0
      %1086 = vmatpush2.bf16.msra.mxu0 0
      %1087 = vmatprep.mubr.bf16.mxu0 0
      %1088 = vmatmul.mubr.bf16.gmra.mxu0 %v1041
      %v1089 = vpop.f32.mrf.mxu0
      %v1090 = vadd.f32 %v1038, %v1089
      %v1091 = vpop.f32.mrf.mxu0
      %v1092 = vpop.f32.mrf.mxu0
      %v1093 = vadd.f32 %v1038, %v1092
      %v1094 = vpop.f32.mrf.mxu0
      %1095 = vmatprep.mubr.bf16.mxu0 0
      %1096 = vmatmul.mubr.bf16.gmra.mxu0 %v1044
      %v1097 = vpop.f32.mrf.mxu0
      %v1098 = vadd.f32 %v1038, %v1097
      %v1099 = vpop.f32.mrf.mxu0
      %v1100 = vpop.f32.mrf.mxu0
      %v1101 = vadd.f32 %v1038, %v1100
      %v1102 = vpop.f32.mrf.mxu0
      %1103 = vmatprep.mubr.bf16.mxu0 0
      %1104 = vmatmul.mubr.bf16.gmra.mxu0 %v1047
      %v1105 = vpop.f32.mrf.mxu0
      %v1106 = vadd.f32 %v1038, %v1105
      %v1107 = vpop.f32.mrf.mxu0
      %v1108 = vpop.f32.mrf.mxu0
      %v1109 = vadd.f32 %v1038, %v1108
      %v1110 = vpop.f32.mrf.mxu0
      %1111 = vmatprep.mubr.bf16.mxu0 0
      %1112 = vmatmul.mubr.bf16.gmra.mxu0 %v1050
      %v1113 = vpop.f32.mrf.mxu0
      %v1114 = vadd.f32 %v1038, %v1113
      %v1115 = vpop.f32.mrf.mxu0
      %v1116 = vpop.f32.mrf.mxu0
      %v1117 = vadd.f32 %v1038, %v1116
      %v1118 = vpop.f32.mrf.mxu0
      %1119 = vdwg.mxu0
      %v1120 = vunpack.c.l.bf16 %v280
      %v1121 = vunpack.c.l.bf16 %v281
      %v1122 = vunpack.c.l.bf16 %v282
      %v1123 = vunpack.c.l.bf16 %v283
      %v1124 = vunpack.c.l.bf16 %v284
      %v1125 = vunpack.c.l.bf16 %v285
      %v1126 = vunpack.c.l.bf16 %v286
      %v1127 = vunpack.c.l.bf16 %v287
      %v1128 = vadd.f32 %v1090, %v1120
      %v1129 = vadd.f32 %v1093, %v1121
      %v1130 = vadd.f32 %v1098, %v1122
      %v1131 = vadd.f32 %v1101, %v1123
      %v1132 = vadd.f32 %v1106, %v1124
      %v1133 = vadd.f32 %v1109, %v1125
      %v1134 = vadd.f32 %v1114, %v1126
      %v1135 = vadd.f32 %v1117, %v1127
      %v1136 = vmax.f32 %v1128, 0.0
      %v1137 = vmax.f32 %v1129, 0.0
      %v1138 = vmax.f32 %v1130, 0.0
      %v1139 = vmax.f32 %v1131, 0.0
      %v1140 = vmax.f32 %v1132, 0.0
      %v1141 = vmax.f32 %v1133, 0.0
      %v1142 = vmax.f32 %v1134, 0.0
      %v1143 = vmax.f32 %v1135, 0.0
      %v1144 = vpack.c.bf16 %v1137, %v1136
      %v1145 = vpack.c.bf16 %v1139, %v1138
      %v1146 = vpack.c.bf16 %v1141, %v1140
      %v1147 = vpack.c.bf16 %v1143, %v1142
      %v1152 = vunpack.c.l.b16 %v1144
      %v1153 = vunpack.c.h.b16 %v1144
      %v1154 = vunpack.c.l.b16 %v1145
      %v1155 = vunpack.c.h.b16 %v1145
      %v1156 = vunpack.c.l.b16 %v1146
      %v1157 = vunpack.c.h.b16 %v1146
      %v1158 = vunpack.c.l.b16 %v1147
      %v1159 = vunpack.c.h.b16 %v1147
      %v1160 = vpack.c.b16 %v1152, %v1152
      %v1161 = vpack.c.b16 %v1153, %v1153
      %v1162 = vpack.c.b16 %v1154, %v1154
      %v1163 = vpack.c.b16 %v1155, %v1155
      %v1164 = vpack.c.b16 %v1156, %v1156
      %v1165 = vpack.c.b16 %v1157, %v1157
      %v1166 = vpack.c.b16 %v1158, %v1158
      %v1167 = vpack.c.b16 %v1159, %v1159
      %vm1176 = vcmask 125952
      %1177 = vst.msk [vmem:[%s278] sm:$0xf] %vm1176, %v1160
      %1178 = vst.msk [vmem:[%s278 + $0x4] sm:$0xf] %vm1176, %v1161
      %1179 = vst.msk [vmem:[%s278 + $0x8] sm:$0xf] %vm1176, %v1162
      %1180 = vst.msk [vmem:[%s278 + $0xc] sm:$0xf] %vm1176, %v1163
      %1181 = vst.msk [vmem:[%s278 + $0x10] sm:$0xf] %vm1176, %v1164
      %1182 = vst.msk [vmem:[%s278 + $0x14] sm:$0xf] %vm1176, %v1165
      %1183 = vst.msk [vmem:[%s278 + $0x18] sm:$0xf] %vm1176, %v1166
      %1184 = vst.msk [vmem:[%s278 + $0x1c] sm:$0xf] %vm1176, %v1167
      %p1185 = scmp.lt.s32.totalorder %s18, 1
      %s1186 = scalar_select %p1185, %s18, 1
      %s1187 = smul.addr %s1186, 8
      %s1188 = smul.addr %s1187, 4
      %s1189 = scalar_lea.vmem %s7, %s1188
      // Predicated region
      $region49: #{tpu_custom_call.1} parent=47 // pred_check
        %p1190 = pneg %p188
      $region50: #{tpu_custom_call.1} parent=47 // pred_check_branch
        %1192 = sbr.rel (%p1190) target = $region52
      $region51: #{tpu_custom_call.1} parent=47 // pred_region
        _
      $region52: #{tpu_custom_call.1} parent=47 // pred_fallthru
        _
    $region48: #{tpu_custom_call.1} parent=5 // pred_fallthru
      _
    %p1193 = scmp.le.s32.totalorder 2, %s13
    // Predicated region
    $region53: #{tpu_custom_call.1} parent=5 // pred_check
      %p1194 = pneg %p1193
    $region54: #{tpu_custom_call.1} parent=5 // pred_check_branch
      %1196 = sbr.rel (%p1194) target = $region56
    $region55: #{tpu_custom_call.1} parent=5 // pred_region
      %s1197 = ssub.s32 %s13, 2
      // Predicated region
      $region57: #{tpu_custom_call.1} parent=55 // pred_check
        %p1198 = pneg %p194
      $region58: #{tpu_custom_call.1} parent=55 // pred_check_branch
        %1200 = sbr.rel (%p1198) target = $region60
      $region59: #{tpu_custom_call.1} parent=55 // pred_region
        %p1201 = scmp.lt.s32.totalorder %s19, 1
        %s1202 = scalar_select %p1201, %s19, 1
        %s1203 = smul.addr %s1202, 8
        %s1204 = smul.addr %s1203, 4
        %s1205 = scalar_lea.vmem %s7, %s1204
      $region60: #{tpu_custom_call.1} parent=55 // pred_fallthru
        _
    $region56: #{tpu_custom_call.1} parent=5 // pred_fallthru
      _
  $region6: #{tpu_custom_call.1} parent=0 // loop_footer
    %s17 = sadd.s32 1, %s13
  $region7: #{tpu_custom_call.1} parent=0 // loop_footer_branch
    %12 = sbr.rel target = $region3
  $region8: #{tpu_custom_call.1} parent=0 // loop_exit
    _

</llo_original>
